<compile_context>
chip_gen: v7x
topology: tpu7x:2x2x1
jax: 0.10.0
libtpu: 0.0.40
codegen_flags: <defaults>
</compile_context>

<pallas_src>
import functools

import jax
import jax.numpy as jnp
from jax.experimental import pallas as pl
from jax.experimental.pallas import tpu as pltpu

LEAKY_SLOPE = 0.2

# Newer JAX: pltpu.CompilerParams; older: pltpu.TPUCompilerParams.
_CompilerParams = getattr(pltpu, "CompilerParams", None) or \
    getattr(pltpu, "TPUCompilerParams", None)


def _leaky(x, slope):
    return jnp.where(x > 0, x, slope * x)


# --------------------------- fused segment stack ---------------------------

def _segment_stack_kernel(*refs, n_layers, cins, K, B, T, slope):
    # refs: x, (w_0, b_0, ..., w_{L-1}, b_{L-1}), o_0..o_{L-1}, cols_scratch
    # x / o_l layout: [C, B*Tp]   (lane index = b*Tp + padded_time)
    # w_l: [Cout, K*Cin]   (column index = k*Cin + cin)
    # b_l: [Cout, 1]
    x_ref = refs[0]
    w_refs = [refs[1 + 2 * l] for l in range(n_layers)]
    b_refs = [refs[2 + 2 * l] for l in range(n_layers)]
    o_refs = list(refs[1 + 2 * n_layers: 1 + 3 * n_layers])
    cols = refs[1 + 3 * n_layers]

    p = (K - 1) // 2
    Tp = T + 2 * p
    Wv = B * Tp - (K - 1)          # stride-1 conv width over the flattened lanes

    cur = x_ref
    for l in range(n_layers):
        cin = cins[l]
        xv = cur[...]                                   # [Cin, B*Tp]
        # im2col: ONE matmul per layer covers all taps and the whole batch.
        for k in range(K):
            cols[k * cin:(k + 1) * cin, 0:Wv] = xv[:, k:k + Wv]
        w = w_refs[l][...]                              # [Cout, K*Cin]
        bias = b_refs[l][...]                           # [Cout, 1] (hoisted)
        y = jnp.dot(w, cols[0:K * cin, 0:Wv],
                    preferred_element_type=jnp.float32) + bias
        if l < n_layers - 1:                            # final conv: no activation
            y = _leaky(y, slope)
        o = o_refs[l]
        o[...] = jnp.zeros(o.shape, o.dtype)            # padding columns = 0
        for b in range(B):
            # valid outputs live at flattened columns b*Tp + t (guard bands
            # between batches absorb the window overlap -> no masking needed)
            o[:, b * Tp + p: b * Tp + p + T] = y[:, b * Tp: b * Tp + T]
        cur = o


def segment_forward(params, features, segment_size, kernel_size, offset_key,
                    slope=LEAKY_SLOPE):
    """features: [B, D, T] -> (disc [B, seg], feature maps [B, C, seg])."""
    B, D, T_total = features.shape
    K = kernel_size
    p = (K - 1) // 2
    T = segment_size
    Tp = T + 2 * p

    # random segment offsets: floor(uniform * (T_total - seg)).clamp(0)
    max_off = T_total - segment_size
    offsets = jnp.maximum(jax.random.uniform(offset_key, (B,)) * max_off,
                          0.0).astype(jnp.int32)
    x = jax.vmap(lambda f, o: jax.lax.dynamic_slice_in_dim(
        f, o, segment_size, axis=1))(features, offsets)        # [B, D, T]

    xp = jnp.pad(x, ((0, 0), (0, 0), (p, p)))                  # [B, D, Tp]
    x_flat = jnp.transpose(xp, (1, 0, 2)).reshape(D, B * Tp)   # lane = b*Tp + t

    cins = tuple(w.shape[1] for (w, _) in params)
    couts = tuple(w.shape[0] for (w, _) in params)
    ins = [x_flat]
    for (w, b) in params:
        cout, cin, _ = w.shape
        ins.append(jnp.transpose(w, (0, 2, 1)).reshape(cout, K * cin))
        ins.append(b.reshape(cout, 1))

    Wv = B * Tp - (K - 1)
    out_shape = tuple(jax.ShapeDtypeStruct((c, B * Tp), jnp.float32)
                      for c in couts)
    kern = functools.partial(_segment_stack_kernel, n_layers=len(params),
                             cins=cins, K=K, B=B, T=T, slope=slope)
    outs = pl.pallas_call(
        kern,
        out_shape=out_shape,
        scratch_shapes=[pltpu.VMEM((K * max(cins), Wv), jnp.float32)],
    )(*ins)

    fmaps = []
    for c, o in zip(couts, outs):
        f = o.reshape(c, B, Tp)[:, :, p:p + T]                 # strip padding
        fmaps.append(jnp.transpose(f, (1, 0, 2)))              # [B, C, T]
    return fmaps[-1][:, 0, :], fmaps


# ---------------------------- fused detail stack ----------------------------

def _detail_plan(calc_channels, kernel_size, downsample_stack, conv_stack,
                 F0, T0):
    K = kernel_size
    p = (K - 1) // 2
    C = calc_channels
    specs = [dict(Cin=1, Cout=C, KH=K, KW=K, sh=1, sw=1, ph=p, pw=p, act=True)]
    for _ in range(downsample_stack):
        specs.append(dict(Cin=C, Cout=C, KH=K, KW=K, sh=2, sw=2,
                          ph=p, pw=p, act=True))
    for _ in range(conv_stack):
        specs.append(dict(Cin=C, Cout=C, KH=1, KW=K, sh=1, sw=1,
                          ph=0, pw=p, act=True))
    specs.append(dict(Cin=C, Cout=1, KH=K, KW=K, sh=1, sw=1,
                      ph=p, pw=p, act=False))
    plan = []
    F_in, T_in = F0, T0
    for l, s in enumerate(specs):
        F_out = (F_in + 2 * s["ph"] - s["KH"]) // s["sh"] + 1
        T_out = (T_in + 2 * s["pw"] - s["KW"]) // s["sw"] + 1
        ph_o = specs[l + 1]["ph"] if l + 1 < len(specs) else 0
        pw_o = specs[l + 1]["pw"] if l + 1 < len(specs) else 0
        plan.append(dict(s, F_in=F_in, T_in=T_in, F_out=F_out, T_out=T_out,
                         in_rows=F_in + 2 * s["ph"], Tp_in=T_in + 2 * s["pw"],
                         out_rows=F_out + 2 * ph_o, Tp_out=T_out + 2 * pw_o,
                         ph_out=ph_o, pw_out=pw_o))
        F_in, T_in = F_out, T_out
    return plan


def _make_select(Tp_in, T_out, sw, B, Wv):
    """0/1 matrix gathering columns b*Tp_in + sw*t -> b*T_out + t."""
    j = jnp.arange(Wv)[:, None]
    m = jnp.arange(B * T_out)[None, :]
    tgt = (m // T_out) * Tp_in + sw * (m % T_out)
    return (j == tgt).astype(jnp.float32)


def _detail_stack_kernel(*refs, plan, B, slope, n_stride):
    # refs: x, (w_l, b_l)*L, S_k for stride layers, o_0..o_{L-1}, cols_scratch
    # x / o_l layout: [F_rows, C, B*Tp]  (padded rows/cols, lane = b*Tp + t)
    L = len(plan)
    x_ref = refs[0]
    w_refs = [refs[1 + 2 * l] for l in range(L)]
    b_refs = [refs[2 + 2 * l] for l in range(L)]
    s_refs = list(refs[1 + 2 * L: 1 + 2 * L + n_stride])
    o_refs = list(refs[1 + 2 * L + n_stride: 1 + 2 * L + n_stride + L])
    cols = refs[1 + 2 * L + n_stride + L]

    prev = x_ref
    s_i = 0
    for l, cfg in enumerate(plan):
        KH, KW = cfg["KH"], cfg["KW"]
        sh, sw = cfg["sh"], cfg["sw"]
        cin = cfg["Cin"]
        Tp_in = cfg["Tp_in"]
        Wv = B * Tp_in - (KW - 1)
        F_out, T_out = cfg["F_out"], cfg["T_out"]
        ph_o, pw_o = cfg["ph_out"], cfg["pw_out"]
        Tp_out = cfg["Tp_out"]
        KC = KH * KW * cin

        w = w_refs[l][...]                         # [Cout, KH*KW*Cin]
        bias = b_refs[l][...]                      # [Cout, 1]   (hoisted)
        if sw > 1:
            sel = s_refs[s_i][...]                 # [Wv, B*T_out]
            s_i += 1

        pv = prev[...]                             # [in_rows, Cin, B*Tp_in]
        o = o_refs[l]
        o[...] = jnp.zeros(o.shape, o.dtype)       # zero padding rows/cols

        for fo in range(F_out):                    # F-stride handled by row index
            for i in range(KH):
                row = pv[sh * fo + i]              # [Cin, B*Tp_in]
                for j in range(KW):
                    cols[(i * KW + j) * cin:(i * KW + j + 1) * cin, 0:Wv] = \
                        row[:, j:j + Wv]
            y = jnp.dot(w, cols[0:KC, 0:Wv],
                        preferred_element_type=jnp.float32) + bias
            if cfg["act"]:
                y = _leaky(y, slope)
            if sw > 1:
                # strided time columns gathered via a tiny 0/1 matmul
                y = jnp.dot(y, sel, preferred_element_type=jnp.float32)
            for b in range(B):
                if sw > 1:
                    seg = y[:, b * T_out:(b + 1) * T_out]
                else:
                    seg = y[:, b * Tp_in: b * Tp_in + T_out]
                o[ph_o + fo, :,
                  b * Tp_out + pw_o: b * Tp_out + pw_o + T_out] = seg
        prev = o


def detail_forward_batched(det_params, freq_indices, features, calc_channels,
                           kernel_size, downsample_stack, conv_stack,
                           slope=LEAKY_SLOPE):
    """All detail discriminators in one pallas_call (grid over discriminator)."""
    B, D, T0 = features.shape
    n_disc = len(freq_indices)
    F0 = freq_indices[0][1] - freq_indices[0][0]
    plan = _detail_plan(calc_channels, kernel_size, downsample_stack,
                        conv_stack, F0, T0)
    p0 = plan[0]

    # input frequency windows, padded + laid out as [F_rows, 1, B*Tp]
    xs = []
    for (lo, hi) in freq_indices:
        win = features[:, lo:hi][:, None]                          # [B,1,F0,T0]
        win = jnp.pad(win, ((0, 0), (0, 0),
                            (p0["ph"], p0["ph"]), (p0["pw"], p0["pw"])))
        win = jnp.transpose(win, (2, 1, 0, 3)).reshape(
            p0["in_rows"], 1, B * p0["Tp_in"])
        xs.append(win)
    x_stack = jnp.stack(xs, axis=0)                                # [n, F, 1, W]

    ins = [x_stack]
    in_specs = [pl.BlockSpec((None,) + x_stack.shape[1:],
                             lambda i: (i, 0, 0, 0))]
    for l, cfg in enumerate(plan):
        KH, KW, cin, cout = cfg["KH"], cfg["KW"], cfg["Cin"], cfg["Cout"]
        w_l = jnp.stack([jnp.transpose(det_params[d][l][0],
                                       (0, 2, 3, 1)).reshape(cout, KH * KW * cin)
                         for d in range(n_disc)])
        b_l = jnp.stack([det_params[d][l][1].reshape(cout, 1)
                         for d in range(n_disc)])
        ins += [w_l, b_l]
        in_specs += [pl.BlockSpec((None, cout, KH * KW * cin),
                                  lambda i: (i, 0, 0)),
                     pl.BlockSpec((None, cout, 1), lambda i: (i, 0, 0))]
    n_stride = 0
    for cfg in plan:
        if cfg["sw"] > 1:
            Wv = B * cfg["Tp_in"] - (cfg["KW"] - 1)
            S = _make_select(cfg["Tp_in"], cfg["T_out"], cfg["sw"], B, Wv)
            ins.append(S)
            in_specs.append(pl.BlockSpec(S.shape, lambda i: (0, 0)))
            n_stride += 1

    out_shape = tuple(jax.ShapeDtypeStruct(
        (n_disc, cfg["out_rows"], cfg["Cout"], B * cfg["Tp_out"]), jnp.float32)
        for cfg in plan)
    out_specs = tuple(pl.BlockSpec(
        (None, cfg["out_rows"], cfg["Cout"], B * cfg["Tp_out"]),
        lambda i: (i, 0, 0, 0)) for cfg in plan)

    max_kc = max(cfg["KH"] * cfg["KW"] * cfg["Cin"] for cfg in plan)
    max_wv = max(B * cfg["Tp_in"] - (cfg["KW"] - 1) for cfg in plan)

    kern = functools.partial(_detail_stack_kernel, plan=plan, B=B,
                             slope=slope, n_stride=n_stride)
    call_kwargs = {}
    if _CompilerParams is not None:
        call_kwargs["compiler_params"] = _CompilerParams(
            dimension_semantics=("parallel",))
    outs = pl.pallas_call(
        kern,
        grid=(n_disc,),
        in_specs=in_specs,
        out_specs=out_specs,
        out_shape=out_shape,
        scratch_shapes=[pltpu.VMEM((max_kc, max_wv), jnp.float32)],
        **call_kwargs,
    )(*ins)

    # strip padding, restore [B, C, F, T] feature maps per discriminator
    fmaps_per_disc = [[] for _ in range(n_disc)]
    for cfg, buf in zip(plan, outs):
        v = buf.reshape(n_disc, cfg["out_rows"], cfg["Cout"], B, cfg["Tp_out"])
        v = v[:, cfg["ph_out"]:cfg["ph_out"] + cfg["F_out"], :, :,
              cfg["pw_out"]:cfg["pw_out"] + cfg["T_out"]]
        v = jnp.transpose(v, (0, 3, 2, 1, 4))                    # [n,B,C,F,T]
        for d in range(n_disc):
            fmaps_per_disc[d].append(v[d])
    disc = [fmaps_per_disc[d][-1][:, 0] for d in range(n_disc)]  # [B, F, T]
    return disc, fmaps_per_disc


# ------------------------------- parameters --------------------------------

def init_conv_params(key, cout, cin, ksize):
    # TODO(synk): weight_norm (w = g * v/||v||) is folded into a plain weight
    # at init time; not equivalent to loading a trained weight_norm checkpoint.
    kshape = ksize if isinstance(ksize, tuple) else (ksize,)
    fan_in = cin
    for k in kshape:
        fan_in *= k
    k1, k2 = jax.random.split(key)
    w = jax.random.normal(k1, (cout, cin) + kshape, jnp.float32) * \
        (2.0 / fan_in) ** 0.5
    b = jax.random.normal(k2, (cout,), jnp.float32) * 0.01
    return w, b


def init_segment_params(key, in_channels, calc_channels, kernel_size,
                        conv_stack):
    keys = jax.random.split(key, conv_stack + 1)
    params = []
    prev = in_channels
    for i in range(conv_stack):
        params.append(init_conv_params(keys[i], calc_channels, prev,
                                       kernel_size))
        prev = calc_channels
    params.append(init_conv_params(keys[-1], 1, calc_channels, kernel_size))
    return params


def init_detail_params(key, calc_channels, kernel_size, downsample_stack,
                       conv_stack):
    n = 1 + downsample_stack + conv_stack + 1
    keys = jax.random.split(key, n)
    params = []
    ki = 0
    params.append(init_conv_params(keys[ki], calc_channels, 1,
                                   (kernel_size, kernel_size))); ki += 1
    for _ in range(downsample_stack):
        params.append(init_conv_params(keys[ki], calc_channels, calc_channels,
                                       (kernel_size, kernel_size))); ki += 1
    for _ in range(conv_stack):
        params.append(init_conv_params(keys[ki], calc_channels, calc_channels,
                                       (1, kernel_size))); ki += 1
    params.append(init_conv_params(keys[ki], 1, calc_channels,
                                   (kernel_size, kernel_size)))
    return params


# ------------------------------ full forward --------------------------------

def discriminator_forward(seg_params, seg_sizes, seg_kernel, offset_keys,
                          det_params, freq_indices, det_channels, det_kernel,
                          det_down, det_conv, features):
    seg_disc, seg_fmaps = [], []
    for p, ss, ok in zip(seg_params, seg_sizes, offset_keys):
        d, fm = segment_forward(p, features, ss, seg_kernel, ok)
        seg_disc.append(d)
        seg_fmaps.extend(fm)
    det_disc, det_fmaps_per_disc = detail_forward_batched(
        det_params, freq_indices, features, det_channels, det_kernel,
        det_down, det_conv)
    det_fmaps = []
    for fm in det_fmaps_per_disc:
        det_fmaps.extend(fm)
    return seg_disc, seg_fmaps, det_disc, det_fmaps


# ---------------------------------- main ------------------------------------

if __name__ == "__main__":
    key = jax.random.PRNGKey(0)

    # "hyper parameters" (small, Mel feature type)
    feature_size = 16          # hp.Sound.Mel_Dim
    batch, time_len = 2, 16

    seg_channels, seg_kernel, seg_stack = 8, 3, 2
    segment_sizes = [8, 12]

    det_channels, det_kernel, det_down, det_conv = 4, 3, 1, 1
    freq_indices = [(fi, fi + feature_size // 2)
                    for fi in range(0, feature_size // 2 + 1,
                                    feature_size // 4)]   # [(0,8),(4,12),(8,16)]

    k_feat, k_params, k_off = jax.random.split(key, 3)
    features = jax.random.normal(k_feat, (batch, feature_size, time_len),
                                 jnp.float32)

    seg_keys = jax.random.split(jax.random.fold_in(k_params, 0),
                                len(segment_sizes))
    det_keys = jax.random.split(jax.random.fold_in(k_params, 1),
                                len(freq_indices))
    seg_params = [init_segment_params(sk, feature_size, seg_channels,
                                      seg_kernel, seg_stack)
                  for sk in seg_keys]
    det_params = [init_detail_params(dk, det_channels, det_kernel,
                                     det_down, det_conv)
                  for dk in det_keys]
    offset_keys = jax.random.split(k_off, len(segment_sizes))

    outs = discriminator_forward(seg_params, segment_sizes, seg_kernel,
                                 offset_keys, det_params, freq_indices,
                                 det_channels, det_kernel, det_down, det_conv,
                                 features)
    jax.block_until_ready(outs)
    print("KERNEL_OK")
</pallas_src>

<mosaic_0001>
module attributes {stable_mosaic.version = 11 : i64} {
  func.func @_segment_stack_kernel(%arg0: memref<16x20xf32, #tpu.memory_space<vmem>>, %arg1: memref<8x48xf32, #tpu.memory_space<vmem>>, %arg2: memref<8x1xf32, #tpu.memory_space<vmem>>, %arg3: memref<8x24xf32, #tpu.memory_space<vmem>>, %arg4: memref<8x1xf32, #tpu.memory_space<vmem>>, %arg5: memref<1x24xf32, #tpu.memory_space<vmem>>, %arg6: memref<1x1xf32, #tpu.memory_space<vmem>>, %arg7: memref<8x20xf32, #tpu.memory_space<vmem>>, %arg8: memref<8x20xf32, #tpu.memory_space<vmem>>, %arg9: memref<1x20xf32, #tpu.memory_space<vmem>>, %arg10: memref<48x18xf32, #tpu.memory_space<vmem>>) attributes {dimension_semantics = [], scalar_prefetch = 0 : i64, scratch_operands = 1 : i64, tpu.core_type = #tpu.core_type<tc>} {
    %c0 = arith.constant 0 : index
    %c0_0 = arith.constant 0 : index
    %0 = vector.load %arg0[%c0, %c0_0] : memref<16x20xf32, #tpu.memory_space<vmem>>, vector<16x20xf32>
    %1 = vector.extract_strided_slice %0 {offsets = [0, 0], sizes = [16, 18], strides = [1, 1]} : vector<16x20xf32> to vector<16x18xf32>
    %c0_1 = arith.constant 0 : index
    %c0_2 = arith.constant 0 : index
    %2 = vector.load %arg10[%c0_1, %c0_2] : memref<48x18xf32, #tpu.memory_space<vmem>>, vector<16x18xf32>
    tpu.vector_store %arg10[%c0_1, %c0_2], %1 {strides = array<i32>} : memref<48x18xf32, #tpu.memory_space<vmem>>, vector<16x18xf32>,
    %3 = vector.extract_strided_slice %0 {offsets = [0, 1], sizes = [16, 18], strides = [1, 1]} : vector<16x20xf32> to vector<16x18xf32>
    %c16 = arith.constant 16 : index
    %c0_3 = arith.constant 0 : index
    %4 = vector.load %arg10[%c16, %c0_3] : memref<48x18xf32, #tpu.memory_space<vmem>>, vector<16x18xf32>
    tpu.vector_store %arg10[%c16, %c0_3], %3 {strides = array<i32>} : memref<48x18xf32, #tpu.memory_space<vmem>>, vector<16x18xf32>,
    %5 = vector.extract_strided_slice %0 {offsets = [0, 2], sizes = [16, 18], strides = [1, 1]} : vector<16x20xf32> to vector<16x18xf32>
    %c32 = arith.constant 32 : index
    %c0_4 = arith.constant 0 : index
    %6 = vector.load %arg10[%c32, %c0_4] : memref<48x18xf32, #tpu.memory_space<vmem>>, vector<16x18xf32>
    tpu.vector_store %arg10[%c32, %c0_4], %5 {strides = array<i32>} : memref<48x18xf32, #tpu.memory_space<vmem>>, vector<16x18xf32>,
    %c0_5 = arith.constant 0 : index
    %c0_6 = arith.constant 0 : index
    %7 = vector.load %arg1[%c0_5, %c0_6] : memref<8x48xf32, #tpu.memory_space<vmem>>, vector<8x48xf32>
    %c0_7 = arith.constant 0 : index
    %c0_8 = arith.constant 0 : index
    %8 = vector.load %arg2[%c0_7, %c0_8] : memref<8x1xf32, #tpu.memory_space<vmem>>, vector<8x1xf32>
    %c0_9 = arith.constant 0 : index
    %c0_10 = arith.constant 0 : index
    %9 = vector.load %arg10[%c0_9, %c0_10] : memref<48x18xf32, #tpu.memory_space<vmem>>, vector<48x18xf32>
    %cst = arith.constant dense<0.000000e+00> : vector<8x18xf32>
    %10 = tpu.matmul %7, %9, %cst {dimension_numbers = #tpu.dot_dimension_numbers<[1], [0], [0], [1], [0, 0, 1, 1], [], []>} : vector<8x48xf32>, vector<48x18xf32>, vector<8x18xf32> -> vector<8x18xf32>
    %11 = vector.broadcast %8 : vector<8x1xf32> to vector<8x18xf32>
    %12 = arith.addf %10, %11 : vector<8x18xf32>
    %cst_11 = arith.constant 0.000000e+00 : f32
    %13 = vector.broadcast %cst_11 : f32 to vector<8x18xf32>
    %14 = arith.cmpf ogt, %12, %13 : vector<8x18xf32>
    %cst_12 = arith.constant 2.000000e-01 : f32
    %15 = vector.broadcast %cst_12 : f32 to vector<8x18xf32>
    %16 = arith.mulf %15, %12 : vector<8x18xf32>
    %17 = arith.select %14, %12, %16 : vector<8x18xi1>, vector<8x18xf32>
    %cst_13 = arith.constant 0.000000e+00 : f32
    %18 = vector.broadcast %cst_13 : f32 to vector<8x20xf32>
    %c0_14 = arith.constant 0 : index
    %c0_15 = arith.constant 0 : index
    %19 = vector.load %arg7[%c0_14, %c0_15] : memref<8x20xf32, #tpu.memory_space<vmem>>, vector<8x20xf32>
    tpu.vector_store %arg7[%c0_14, %c0_15], %18 {strides = array<i32>} : memref<8x20xf32, #tpu.memory_space<vmem>>, vector<8x20xf32>,
    %20 = vector.extract_strided_slice %17 {offsets = [0, 0], sizes = [8, 8], strides = [1, 1]} : vector<8x18xf32> to vector<8x8xf32>
    %c0_16 = arith.constant 0 : index
    %c1 = arith.constant 1 : index
    %21 = vector.load %arg7[%c0_16, %c1] : memref<8x20xf32, #tpu.memory_space<vmem>>, vector<8x8xf32>
    tpu.vector_store %arg7[%c0_16, %c1], %20 {strides = array<i32>} : memref<8x20xf32, #tpu.memory_space<vmem>>, vector<8x8xf32>,
    %22 = vector.extract_strided_slice %17 {offsets = [0, 10], sizes = [8, 8], strides = [1, 1]} : vector<8x18xf32> to vector<8x8xf32>
    %c0_17 = arith.constant 0 : index
    %c11 = arith.constant 11 : index
    %23 = vector.load %arg7[%c0_17, %c11] : memref<8x20xf32, #tpu.memory_space<vmem>>, vector<8x8xf32>
    tpu.vector_store %arg7[%c0_17, %c11], %22 {strides = array<i32>} : memref<8x20xf32, #tpu.memory_space<vmem>>, vector<8x8xf32>,
    %c0_18 = arith.constant 0 : index
    %c0_19 = arith.constant 0 : index
    %24 = vector.load %arg7[%c0_18, %c0_19] : memref<8x20xf32, #tpu.memory_space<vmem>>, vector<8x20xf32>
    %25 = vector.extract_strided_slice %24 {offsets = [0, 0], sizes = [8, 18], strides = [1, 1]} : vector<8x20xf32> to vector<8x18xf32>
    %c0_20 = arith.constant 0 : index
    %c0_21 = arith.constant 0 : index
    %26 = vector.load %arg10[%c0_20, %c0_21] : memref<48x18xf32, #tpu.memory_space<vmem>>, vector<8x18xf32>
    tpu.vector_store %arg10[%c0_20, %c0_21], %25 {strides = array<i32>} : memref<48x18xf32, #tpu.memory_space<vmem>>, vector<8x18xf32>,
    %27 = vector.extract_strided_slice %24 {offsets = [0, 1], sizes = [8, 18], strides = [1, 1]} : vector<8x20xf32> to vector<8x18xf32>
    %c8 = arith.constant 8 : index
    %c0_22 = arith.constant 0 : index
    %28 = vector.load %arg10[%c8, %c0_22] : memref<48x18xf32, #tpu.memory_space<vmem>>, vector<8x18xf32>
    tpu.vector_store %arg10[%c8, %c0_22], %27 {strides = array<i32>} : memref<48x18xf32, #tpu.memory_space<vmem>>, vector<8x18xf32>,
    %29 = vector.extract_strided_slice %24 {offsets = [0, 2], sizes = [8, 18], strides = [1, 1]} : vector<8x20xf32> to vector<8x18xf32>
    %c16_23 = arith.constant 16 : index
    %c0_24 = arith.constant 0 : index
    %30 = vector.load %arg10[%c16_23, %c0_24] : memref<48x18xf32, #tpu.memory_space<vmem>>, vector<8x18xf32>
    tpu.vector_store %arg10[%c16_23, %c0_24], %29 {strides = array<i32>} : memref<48x18xf32, #tpu.memory_space<vmem>>, vector<8x18xf32>,
    %c0_25 = arith.constant 0 : index
    %c0_26 = arith.constant 0 : index
    %31 = vector.load %arg3[%c0_25, %c0_26] : memref<8x24xf32, #tpu.memory_space<vmem>>, vector<8x24xf32>
    %c0_27 = arith.constant 0 : index
    %c0_28 = arith.constant 0 : index
    %32 = vector.load %arg4[%c0_27, %c0_28] : memref<8x1xf32, #tpu.memory_space<vmem>>, vector<8x1xf32>
    %c0_29 = arith.constant 0 : index
    %c0_30 = arith.constant 0 : index
    %33 = vector.load %arg10[%c0_29, %c0_30] : memref<48x18xf32, #tpu.memory_space<vmem>>, vector<24x18xf32>
    %cst_31 = arith.constant dense<0.000000e+00> : vector<8x18xf32>
    %34 = tpu.matmul %31, %33, %cst_31 {dimension_numbers = #tpu.dot_dimension_numbers<[1], [0], [0], [1], [0, 0, 1, 1], [], []>} : vector<8x24xf32>, vector<24x18xf32>, vector<8x18xf32> -> vector<8x18xf32>
    %35 = vector.broadcast %32 : vector<8x1xf32> to vector<8x18xf32>
    %36 = arith.addf %34, %35 : vector<8x18xf32>
    %cst_32 = arith.constant 0.000000e+00 : f32
    %37 = vector.broadcast %cst_32 : f32 to vector<8x18xf32>
    %38 = arith.cmpf ogt, %36, %37 : vector<8x18xf32>
    %cst_33 = arith.constant 2.000000e-01 : f32
    %39 = vector.broadcast %cst_33 : f32 to vector<8x18xf32>
    %40 = arith.mulf %39, %36 : vector<8x18xf32>
    %41 = arith.select %38, %36, %40 : vector<8x18xi1>, vector<8x18xf32>
    %cst_34 = arith.constant 0.000000e+00 : f32
    %42 = vector.broadcast %cst_34 : f32 to vector<8x20xf32>
    %c0_35 = arith.constant 0 : index
    %c0_36 = arith.constant 0 : index
    %43 = vector.load %arg8[%c0_35, %c0_36] : memref<8x20xf32, #tpu.memory_space<vmem>>, vector<8x20xf32>
    tpu.vector_store %arg8[%c0_35, %c0_36], %42 {strides = array<i32>} : memref<8x20xf32, #tpu.memory_space<vmem>>, vector<8x20xf32>,
    %44 = vector.extract_strided_slice %41 {offsets = [0, 0], sizes = [8, 8], strides = [1, 1]} : vector<8x18xf32> to vector<8x8xf32>
    %c0_37 = arith.constant 0 : index
    %c1_38 = arith.constant 1 : index
    %45 = vector.load %arg8[%c0_37, %c1_38] : memref<8x20xf32, #tpu.memory_space<vmem>>, vector<8x8xf32>
    tpu.vector_store %arg8[%c0_37, %c1_38], %44 {strides = array<i32>} : memref<8x20xf32, #tpu.memory_space<vmem>>, vector<8x8xf32>,
    %46 = vector.extract_strided_slice %41 {offsets = [0, 10], sizes = [8, 8], strides = [1, 1]} : vector<8x18xf32> to vector<8x8xf32>
    %c0_39 = arith.constant 0 : index
    %c11_40 = arith.constant 11 : index
    %47 = vector.load %arg8[%c0_39, %c11_40] : memref<8x20xf32, #tpu.memory_space<vmem>>, vector<8x8xf32>
    tpu.vector_store %arg8[%c0_39, %c11_40], %46 {strides = array<i32>} : memref<8x20xf32, #tpu.memory_space<vmem>>, vector<8x8xf32>,
    %c0_41 = arith.constant 0 : index
    %c0_42 = arith.constant 0 : index
    %48 = vector.load %arg8[%c0_41, %c0_42] : memref<8x20xf32, #tpu.memory_space<vmem>>, vector<8x20xf32>
    %49 = vector.extract_strided_slice %48 {offsets = [0, 0], sizes = [8, 18], strides = [1, 1]} : vector<8x20xf32> to vector<8x18xf32>
    %c0_43 = arith.constant 0 : index
    %c0_44 = arith.constant 0 : index
    %50 = vector.load %arg10[%c0_43, %c0_44] : memref<48x18xf32, #tpu.memory_space<vmem>>, vector<8x18xf32>
    tpu.vector_store %arg10[%c0_43, %c0_44], %49 {strides = array<i32>} : memref<48x18xf32, #tpu.memory_space<vmem>>, vector<8x18xf32>,
    %51 = vector.extract_strided_slice %48 {offsets = [0, 1], sizes = [8, 18], strides = [1, 1]} : vector<8x20xf32> to vector<8x18xf32>
    %c8_45 = arith.constant 8 : index
    %c0_46 = arith.constant 0 : index
    %52 = vector.load %arg10[%c8_45, %c0_46] : memref<48x18xf32, #tpu.memory_space<vmem>>, vector<8x18xf32>
    tpu.vector_store %arg10[%c8_45, %c0_46], %51 {strides = array<i32>} : memref<48x18xf32, #tpu.memory_space<vmem>>, vector<8x18xf32>,
    %53 = vector.extract_strided_slice %48 {offsets = [0, 2], sizes = [8, 18], strides = [1, 1]} : vector<8x20xf32> to vector<8x18xf32>
    %c16_47 = arith.constant 16 : index
    %c0_48 = arith.constant 0 : index
    %54 = vector.load %arg10[%c16_47, %c0_48] : memref<48x18xf32, #tpu.memory_space<vmem>>, vector<8x18xf32>
    tpu.vector_store %arg10[%c16_47, %c0_48], %53 {strides = array<i32>} : memref<48x18xf32, #tpu.memory_space<vmem>>, vector<8x18xf32>,
    %c0_49 = arith.constant 0 : index
    %c0_50 = arith.constant 0 : index
    %55 = vector.load %arg5[%c0_49, %c0_50] : memref<1x24xf32, #tpu.memory_space<vmem>>, vector<1x24xf32>
    %c0_51 = arith.constant 0 : index
    %c0_52 = arith.constant 0 : index
    %56 = vector.load %arg6[%c0_51, %c0_52] : memref<1x1xf32, #tpu.memory_space<vmem>>, vector<1x1xf32>
    %c0_53 = arith.constant 0 : index
    %c0_54 = arith.constant 0 : index
    %57 = vector.load %arg10[%c0_53, %c0_54] : memref<48x18xf32, #tpu.memory_space<vmem>>, vector<24x18xf32>
    %cst_55 = arith.constant dense<0.000000e+00> : vector<1x18xf32>
    %58 = tpu.matmul %55, %57, %cst_55 {dimension_numbers = #tpu.dot_dimension_numbers<[1], [0], [0], [1], [0, 0, 1, 1], [], []>} : vector<1x24xf32>, vector<24x18xf32>, vector<1x18xf32> -> vector<1x18xf32>
    %59 = vector.broadcast %56 : vector<1x1xf32> to vector<1x18xf32>
    %60 = arith.addf %58, %59 : vector<1x18xf32>
    %cst_56 = arith.constant 0.000000e+00 : f32
    %61 = vector.broadcast %cst_56 : f32 to vector<1x20xf32>
    %c0_57 = arith.constant 0 : index
    %c0_58 = arith.constant 0 : index
    %62 = vector.load %arg9[%c0_57, %c0_58] : memref<1x20xf32, #tpu.memory_space<vmem>>, vector<1x20xf32>
    tpu.vector_store %arg9[%c0_57, %c0_58], %61 {strides = array<i32>} : memref<1x20xf32, #tpu.memory_space<vmem>>, vector<1x20xf32>,
    %63 = vector.extract_strided_slice %60 {offsets = [0, 0], sizes = [1, 8], strides = [1, 1]} : vector<1x18xf32> to vector<1x8xf32>
    %c0_59 = arith.constant 0 : index
    %c1_60 = arith.constant 1 : index
    %64 = vector.load %arg9[%c0_59, %c1_60] : memref<1x20xf32, #tpu.memory_space<vmem>>, vector<1x8xf32>
    tpu.vector_store %arg9[%c0_59, %c1_60], %63 {strides = array<i32>} : memref<1x20xf32, #tpu.memory_space<vmem>>, vector<1x8xf32>,
    %65 = vector.extract_strided_slice %60 {offsets = [0, 10], sizes = [1, 8], strides = [1, 1]} : vector<1x18xf32> to vector<1x8xf32>
    %c0_61 = arith.constant 0 : index
    %c11_62 = arith.constant 11 : index
    %66 = vector.load %arg9[%c0_61, %c11_62] : memref<1x20xf32, #tpu.memory_space<vmem>>, vector<1x8xf32>
    tpu.vector_store %arg9[%c0_61, %c11_62], %65 {strides = array<i32>} : memref<1x20xf32, #tpu.memory_space<vmem>>, vector<1x8xf32>,
    return
  }
}

</mosaic_0001>

<llo_original>
// kernel: tpu_custom_call.1
$region0: #{tpu_custom_call.1}
  #allocation0 [shape = 'u32[]', space=smem, size = 0x4, offset = 0x4, fixed_abs, tag = 'smem constant byte address 0x4 - core index']
  #allocation1 [shape = 'u32[144,128]{1,0:T(1,128)}', space=vmem, size = 0x12000, scoped, tag = 'internal scratch']
  #allocation2 [shape = 'f32[48,18]{1,0:T(8,128)}', space=vmem, size = 0x6000, scoped, tag = 'scratch operand']
  #allocation3 [shape = 'f32[1,1]{1,0:T(1,128)S(1)}', space=vmem, size = 0x200, scoped, tag = 'scoped memory for tpu_custom_call.1']
  %s0 = inlined_call_operand.vmem [shape: f32[16,20], index: 0, kind: input, shape index: {}]
  %s1 = inlined_call_operand.vmem [shape: f32[8,48], index: 1, kind: input, shape index: {}]
  %s2 = inlined_call_operand.vmem [shape: f32[8,1], index: 2, kind: input, shape index: {}]
  %s3 = inlined_call_operand.vmem [shape: f32[8,24], index: 3, kind: input, shape index: {}]
  %s4 = inlined_call_operand.vmem [shape: f32[8,1], index: 4, kind: input, shape index: {}]
  %s5 = inlined_call_operand.vmem [shape: f32[1,24], index: 5, kind: input, shape index: {}]
  %s6 = inlined_call_operand.<no memory space> [shape: f32[1,1], index: 6, kind: input, shape index: {}]
  %s7 = inlined_call_operand.hbm [shape: f32[8,20], index: 7, kind: output, shape index: {0}]
  %s8 = inlined_call_operand.hbm [shape: f32[8,20], index: 8, kind: output, shape index: {1}]
  %s9 = inlined_call_operand.hbm [shape: f32[1,20], index: 9, kind: output, shape index: {2}]
  %10 = xla_tuple %s7, %s8, %s9
  %s11 = sld [smem:[#allocation0]]
  $region54: #{tpu_custom_call.1} parent=0
    _
  %s13 = ssub.s32 1, %s11
  %s14 = scalar_select 0, %s13, %s11
  %v15 = vstv %s6
  %16 = vst [vmem:[#allocation3] sm:$0x1] %v15
  $region1: #{tpu_custom_call.1} parent=0
    #allocation4 [shape = 'u8[4096]{0}', space=vmem, size = 0x1000, scoped, tag = 'output window, operand 0, single buffered']
    #allocation5 [shape = 's32[1]{0}', space=sflag, size = 0x4, scoped, tag = 'scoped memory for tpu_custom_call.1']
    #allocation6 [shape = 'u8[4096]{0}', space=vmem, size = 0x1000, scoped, tag = 'output window, operand 1, single buffered']
    #allocation7 [shape = 's32[1]{0}', space=sflag, size = 0x4, scoped, tag = 'scoped memory for tpu_custom_call.1']
    #allocation8 [shape = 'u8[512]{0}', space=vmem, size = 0x400, scoped, tag = 'output window, operand 2, single buffered']
    %17 = vsyncpa [#allocation5], 0
    %18 = vsyncpa [#allocation7], 0
    // Predicated region
    $region2: #{tpu_custom_call.1} parent=1 // pred_check
      _
    $region3: #{tpu_custom_call.1} parent=1 // pred_check_branch
      %20 = sbr.rel (0) target = $region5
    $region4: #{tpu_custom_call.1} parent=1 // pred_region
      _
    $region5: #{tpu_custom_call.1} parent=1 // pred_fallthru
      _
    // Predicated region
    $region6: #{tpu_custom_call.1} parent=1 // pred_check
      _
    $region7: #{tpu_custom_call.1} parent=1 // pred_check_branch
      %22 = sbr.rel (0) target = $region9
    $region8: #{tpu_custom_call.1} parent=1 // pred_region
      _
    $region9: #{tpu_custom_call.1} parent=1 // pred_fallthru
      _
    // Predicated region
    $region10: #{tpu_custom_call.1} parent=1 // pred_check
      _
    $region11: #{tpu_custom_call.1} parent=1 // pred_check_branch
      %24 = sbr.rel (0) target = $region13
    $region12: #{tpu_custom_call.1} parent=1 // pred_region
      _
    $region13: #{tpu_custom_call.1} parent=1 // pred_fallthru
      _
    // Predicated region
    $region14: #{tpu_custom_call.1} parent=1 // pred_check
      _
    $region15: #{tpu_custom_call.1} parent=1 // pred_check_branch
      %26 = sbr.rel (0) target = $region17
    $region16: #{tpu_custom_call.1} parent=1 // pred_region
      _
    $region17: #{tpu_custom_call.1} parent=1 // pred_fallthru
      _
    // Predicated region
    $region18: #{tpu_custom_call.1} parent=1 // pred_check
      _
    $region19: #{tpu_custom_call.1} parent=1 // pred_check_branch
      %28 = sbr.rel (0) target = $region21
    $region20: #{tpu_custom_call.1} parent=1 // pred_region
      _
    $region21: #{tpu_custom_call.1} parent=1 // pred_fallthru
      _
    // Predicated region
    $region22: #{tpu_custom_call.1} parent=1 // pred_check
      _
    $region23: #{tpu_custom_call.1} parent=1 // pred_check_branch
      %30 = sbr.rel (0) target = $region25
    $region24: #{tpu_custom_call.1} parent=1 // pred_region
      _
    $region25: #{tpu_custom_call.1} parent=1 // pred_fallthru
      _
    // Predicated region
    $region26: #{tpu_custom_call.1} parent=1 // pred_check
      _
    $region27: #{tpu_custom_call.1} parent=1 // pred_check_branch
      %32 = sbr.rel (0) target = $region29
    $region28: #{tpu_custom_call.1} parent=1 // pred_region
      _
    $region29: #{tpu_custom_call.1} parent=1 // pred_fallthru
      _
    %v33 = vld [vmem:[%s0] sm:$0xff]
    %v34 = vld [vmem:[%s0 + $0x8] sm:$0xff]
    %vm35 = vcmask 146432
    %36 = vst.msk [vmem:[#allocation2] sm:$0xff] %vm35, %v33
    %37 = vst.msk [vmem:[#allocation2 + $0x8] sm:$0xff] %vm35, %v34
    %40 = vrot.lane.b32.xlu0 %v33, 127
    %v41 = vpop.permute.xlu0 %40
    %42 = vrot.lane.b32.xlu0 %v34, 127
    %v43 = vpop.permute.xlu0 %42
    %46 = vst.msk [vmem:[#allocation2 + $0x10] sm:$0xff] %vm35, %v41
    %47 = vst.msk [vmem:[#allocation2 + $0x18] sm:$0xff] %vm35, %v43
    %48 = vrot.lane.b32.xlu0 %v33, 126
    %v49 = vpop.permute.xlu0 %48
    %50 = vrot.lane.b32.xlu0 %v34, 126
    %v51 = vpop.permute.xlu0 %50
    %54 = vst.msk [vmem:[#allocation2 + $0x20] sm:$0xff] %vm35, %v49
    %55 = vst.msk [vmem:[#allocation2 + $0x28] sm:$0xff] %vm35, %v51
    %v56 = vld [vmem:[%s1] sm:$0xff]
    %v57 = vld [vmem:[%s2] sm:$0xff]
    %v58 = vld [vmem:[#allocation2] sm:$0xff]
    %v59 = vld [vmem:[#allocation2 + $0x8] sm:$0xff]
    %v60 = vld [vmem:[#allocation2 + $0x10] sm:$0xff]
    %v61 = vld [vmem:[#allocation2 + $0x18] sm:$0xff]
    %v62 = vld [vmem:[#allocation2 + $0x20] sm:$0xff]
    %v63 = vld [vmem:[#allocation2 + $0x28] sm:$0xff]
    %65 = vset.pattern.permute.xlu0 0
    %66 = vperm.xlu0 %65, %v57
    %v67 = vpop.permute.xlu0 %66
    %vm69 = vcmask 392192
    %v71 = vsel %vm69, %v56, 0
    %73 = vmatprep.subr.mxu0 0.0
    %74 = vmatpush1.msra.mxu0 %v58
    %75 = vmatprep.subr.mxu0 0.0
    %76 = vmatpush1.msra.mxu0 %v59
    %77 = vmatprep.subr.mxu0 0.0
    %78 = vmatpush1.msra.mxu0 %v60
    %79 = vmatprep.subr.mxu0 0.0
    %80 = vmatpush1.msra.mxu0 %v61
    %81 = vmatprep.subr.mxu0 0.0
    %82 = vmatpush1.msra.mxu0 %v62
    %83 = vmatprep.subr.mxu0 0.0
    %84 = vmatpush1.msra.mxu0 %v63
    %85 = vmatprep.subr.mxu0 0.0
    %86 = vmatpush1.msra.mxu0 0.0
    %87 = vmatprep.subr.mxu0 0.0
    %88 = vmatpush1.msra.mxu0 0.0
    %89 = vmatprep.subr.mxu0 0.0
    %90 = vmatpush1.msra.mxu0 0.0
    %91 = vmatprep.subr.mxu0 0.0
    %92 = vmatpush1.msra.mxu0 0.0
    %93 = vmatprep.subr.mxu0 0.0
    %94 = vmatpush1.msra.mxu0 0.0
    %95 = vmatprep.subr.mxu0 0.0
    %96 = vmatpush1.msra.mxu0 0.0
    %97 = vmatprep.subr.mxu0 0.0
    %98 = vmatpush1.msra.mxu0 0.0
    %99 = vmatprep.subr.mxu0 0.0
    %100 = vmatpush1.msra.mxu0 0.0
    %101 = vmatprep.subr.mxu0 0.0
    %102 = vmatpush1.msra.mxu0 0.0
    %103 = vmatprep.subr.mxu0 0.0
    %104 = vmatpush1.msra.mxu0 0.0
    %105 = vmatprep.subr.mxu0 0.0
    %106 = vmatpush1.msra.mxu0 0.0
    %107 = vmatprep.subr.mxu0 0.0
    %108 = vmatpush1.msra.mxu0 0.0
    %109 = vmatprep.subr.mxu0 0.0
    %110 = vmatpush1.msra.mxu0 0.0
    %111 = vmatprep.subr.mxu0 0.0
    %112 = vmatpush1.msra.mxu0 0.0
    %113 = vmatprep.subr.mxu0 0.0
    %114 = vmatpush1.msra.mxu0 0.0
    %115 = vmatprep.subr.mxu0 0.0
    %116 = vmatpush1.msra.mxu0 0.0
    %117 = vmatprep.subr.mxu0 0.0
    %118 = vmatpush1.msra.mxu0 0.0
    %119 = vmatprep.subr.mxu0 0.0
    %120 = vmatpush1.msra.mxu0 0.0
    %121 = vmatprep.subr.mxu0 0.0
    %122 = vmatpush1.msra.mxu0 0.0
    %123 = vmatprep.subr.mxu0 0.0
    %124 = vmatpush1.msra.mxu0 0.0
    %125 = vmatprep.subr.mxu0 0.0
    %126 = vmatpush1.msra.mxu0 0.0
    %127 = vmatprep.subr.mxu0 0.0
    %128 = vmatpush1.msra.mxu0 0.0
    %129 = vmatprep.subr.mxu0 0.0
    %130 = vmatpush1.msra.mxu0 0.0
    %131 = vmatprep.subr.mxu0 0.0
    %132 = vmatpush1.msra.mxu0 0.0
    %133 = vmatprep.subr.mxu0 0.0
    %134 = vmatpush1.msra.mxu0 0.0
    %135 = vmatprep.subr.mxu0 0.0
    %136 = vmatpush1.msra.mxu0 0.0
    %137 = vmatprep.mubr.f32.mxu0 0.0
    %138 = vmatmul.mubr.f32.gmra.mrb[0].mxu0 %v71
    %v139 = vpop.f32.mrb[0].mxu0
    %v140 = vadd.f32 %v67, %v139
    %v141 = vpop.f32.mrb[0].mxu0
    %142 = vdwg.mxu0
    %vm143 = vcmp.gt.f32.partialorder %v140, 0.0
    %v144 = vmul.f32 %v140, 0.2
    %v145 = vsel %vm143, %v140, %v144
    %vm146 = vcmask 162816
    %147 = vst.msk [vmem:[#allocation4] sm:$0xff] %vm146, 0.0
    %149 = vrot.lane.b32.xlu0 %v145, 1
    %v150 = vpop.permute.xlu0 %149
    %vm152 = vcmask 72712
    %153 = vst.msk [vmem:[#allocation4] sm:$0xff] %vm152, %v150
    %vm154 = vcmask 154712
    %155 = vst.msk [vmem:[#allocation4] sm:$0xff] %vm154, %v150
    %v156 = vld [vmem:[#allocation4] sm:$0xff]
    %157 = vst.msk [vmem:[#allocation2] sm:$0xff] %vm35, %v156
    %159 = vrot.lane.b32.xlu0 %v156, 127
    %v160 = vpop.permute.xlu0 %159
    %162 = vst.msk [vmem:[#allocation2 + $0x8] sm:$0xff] %vm35, %v160
    %163 = vrot.lane.b32.xlu0 %v156, 126
    %v164 = vpop.permute.xlu0 %163
    %166 = vst.msk [vmem:[#allocation2 + $0x10] sm:$0xff] %vm35, %v164
    %v167 = vld [vmem:[%s3] sm:$0xff]
    %v168 = vld [vmem:[%s4] sm:$0xff]
    %v169 = vld [vmem:[#allocation2] sm:$0xff]
    %v170 = vld [vmem:[#allocation2 + $0x8] sm:$0xff]
    %v171 = vld [vmem:[#allocation2 + $0x10] sm:$0xff]
    %173 = vset.pattern.permute.xlu0 0
    %174 = vperm.xlu0 %173, %v168
    %v175 = vpop.permute.xlu0 %174
    %vm177 = vcmask 195584
    %v179 = vsel %vm177, %v167, 0
    %181 = vmatprep.subr.mxu0 0.0
    %182 = vmatpush1.msra.mxu0 %v169
    %183 = vmatprep.subr.mxu0 0.0
    %184 = vmatpush1.msra.mxu0 %v170
    %185 = vmatprep.subr.mxu0 0.0
    %186 = vmatpush1.msra.mxu0 %v171
    %187 = vmatprep.subr.mxu0 0.0
    %188 = vmatpush1.msra.mxu0 0.0
    %189 = vmatprep.subr.mxu0 0.0
    %190 = vmatpush1.msra.mxu0 0.0
    %191 = vmatprep.subr.mxu0 0.0
    %192 = vmatpush1.msra.mxu0 0.0
    %193 = vmatprep.subr.mxu0 0.0
    %194 = vmatpush1.msra.mxu0 0.0
    %195 = vmatprep.subr.mxu0 0.0
    %196 = vmatpush1.msra.mxu0 0.0
    %197 = vmatprep.subr.mxu0 0.0
    %198 = vmatpush1.msra.mxu0 0.0
    %199 = vmatprep.subr.mxu0 0.0
    %200 = vmatpush1.msra.mxu0 0.0
    %201 = vmatprep.subr.mxu0 0.0
    %202 = vmatpush1.msra.mxu0 0.0
    %203 = vmatprep.subr.mxu0 0.0
    %204 = vmatpush1.msra.mxu0 0.0
    %205 = vmatprep.subr.mxu0 0.0
    %206 = vmatpush1.msra.mxu0 0.0
    %207 = vmatprep.subr.mxu0 0.0
    %208 = vmatpush1.msra.mxu0 0.0
    %209 = vmatprep.subr.mxu0 0.0
    %210 = vmatpush1.msra.mxu0 0.0
    %211 = vmatprep.subr.mxu0 0.0
    %212 = vmatpush1.msra.mxu0 0.0
    %213 = vmatprep.subr.mxu0 0.0
    %214 = vmatpush1.msra.mxu0 0.0
    %215 = vmatprep.subr.mxu0 0.0
    %216 = vmatpush1.msra.mxu0 0.0
    %217 = vmatprep.subr.mxu0 0.0
    %218 = vmatpush1.msra.mxu0 0.0
    %219 = vmatprep.subr.mxu0 0.0
    %220 = vmatpush1.msra.mxu0 0.0
    %221 = vmatprep.subr.mxu0 0.0
    %222 = vmatpush1.msra.mxu0 0.0
    %223 = vmatprep.subr.mxu0 0.0
    %224 = vmatpush1.msra.mxu0 0.0
    %225 = vmatprep.subr.mxu0 0.0
    %226 = vmatpush1.msra.mxu0 0.0
    %227 = vmatprep.subr.mxu0 0.0
    %228 = vmatpush1.msra.mxu0 0.0
    %229 = vmatprep.subr.mxu0 0.0
    %230 = vmatpush1.msra.mxu0 0.0
    %231 = vmatprep.subr.mxu0 0.0
    %232 = vmatpush1.msra.mxu0 0.0
    %233 = vmatprep.subr.mxu0 0.0
    %234 = vmatpush1.msra.mxu0 0.0
    %235 = vmatprep.subr.mxu0 0.0
    %236 = vmatpush1.msra.mxu0 0.0
    %237 = vmatprep.subr.mxu0 0.0
    %238 = vmatpush1.msra.mxu0 0.0
    %239 = vmatprep.subr.mxu0 0.0
    %240 = vmatpush1.msra.mxu0 0.0
    %241 = vmatprep.subr.mxu0 0.0
    %242 = vmatpush1.msra.mxu0 0.0
    %243 = vmatprep.subr.mxu0 0.0
    %244 = vmatpush1.msra.mxu0 0.0
    %245 = vmatprep.mubr.f32.mxu0 0.0
    %246 = vmatmul.mubr.f32.gmra.mrb[0].mxu0 %v179
    %v247 = vpop.f32.mrb[0].mxu0
    %v248 = vadd.f32 %v175, %v247
    %v249 = vpop.f32.mrb[0].mxu0
    %250 = vdwg.mxu0
    %vm251 = vcmp.gt.f32.partialorder %v248, 0.0
    %v252 = vmul.f32 %v248, 0.2
    %v253 = vsel %vm251, %v248, %v252
    %254 = vst.msk [vmem:[#allocation6] sm:$0xff] %vm146, 0.0
    %256 = vrot.lane.b32.xlu0 %v253, 1
    %v257 = vpop.permute.xlu0 %256
    %259 = vst.msk [vmem:[#allocation6] sm:$0xff] %vm152, %v257
    %260 = vst.msk [vmem:[#allocation6] sm:$0xff] %vm154, %v257
    %v261 = vld [vmem:[#allocation6] sm:$0xff]
    %262 = vst.msk [vmem:[#allocation2] sm:$0xff] %vm35, %v261
    %264 = vrot.lane.b32.xlu0 %v261, 127
    %v265 = vpop.permute.xlu0 %264
    %267 = vst.msk [vmem:[#allocation2 + $0x8] sm:$0xff] %vm35, %v265
    %268 = vrot.lane.b32.xlu0 %v261, 126
    %v269 = vpop.permute.xlu0 %268
    %271 = vst.msk [vmem:[#allocation2 + $0x10] sm:$0xff] %vm35, %v269
    %v272 = vld [vmem:[%s5] sm:$0x1]
    %v273 = vld [vmem:[#allocation3] sm:$0x1]
    %v274 = vld [vmem:[#allocation2] sm:$0xff]
    %v275 = vld [vmem:[#allocation2 + $0x8] sm:$0xff]
    %v276 = vld [vmem:[#allocation2 + $0x10] sm:$0xff]
    %278 = vset.pattern.permute.xlu0 0
    %279 = vperm.xlu0 %278, %v273
    %v280 = vpop.permute.xlu0 %279
    %v282 = vlaneseq
    %v283 = vshrl.u32 %v282, 7
    %v284 = vsub.s32 0, %v283
    %v285 = vrot.slane %v280, %v284
    %v287 = vsel %vm177, %v272, 0
    %289 = vmatprep.subr.mxu0 0.0
    %290 = vmatpush1.msra.mxu0 %v274
    %291 = vmatprep.subr.mxu0 0.0
    %292 = vmatpush1.msra.mxu0 %v275
    %293 = vmatprep.subr.mxu0 0.0
    %294 = vmatpush1.msra.mxu0 %v276
    %295 = vmatprep.subr.mxu0 0.0
    %296 = vmatpush1.msra.mxu0 0.0
    %297 = vmatprep.subr.mxu0 0.0
    %298 = vmatpush1.msra.mxu0 0.0
    %299 = vmatprep.subr.mxu0 0.0
    %300 = vmatpush1.msra.mxu0 0.0
    %301 = vmatprep.subr.mxu0 0.0
    %302 = vmatpush1.msra.mxu0 0.0
    %303 = vmatprep.subr.mxu0 0.0
    %304 = vmatpush1.msra.mxu0 0.0
    %305 = vmatprep.subr.mxu0 0.0
    %306 = vmatpush1.msra.mxu0 0.0
    %307 = vmatprep.subr.mxu0 0.0
    %308 = vmatpush1.msra.mxu0 0.0
    %309 = vmatprep.subr.mxu0 0.0
    %310 = vmatpush1.msra.mxu0 0.0
    %311 = vmatprep.subr.mxu0 0.0
    %312 = vmatpush1.msra.mxu0 0.0
    %313 = vmatprep.subr.mxu0 0.0
    %314 = vmatpush1.msra.mxu0 0.0
    %315 = vmatprep.subr.mxu0 0.0
    %316 = vmatpush1.msra.mxu0 0.0
    %317 = vmatprep.subr.mxu0 0.0
    %318 = vmatpush1.msra.mxu0 0.0
    %319 = vmatprep.subr.mxu0 0.0
    %320 = vmatpush1.msra.mxu0 0.0
    %321 = vmatprep.subr.mxu0 0.0
    %322 = vmatpush1.msra.mxu0 0.0
    %323 = vmatprep.subr.mxu0 0.0
    %324 = vmatpush1.msra.mxu0 0.0
    %325 = vmatprep.subr.mxu0 0.0
    %326 = vmatpush1.msra.mxu0 0.0
    %327 = vmatprep.subr.mxu0 0.0
    %328 = vmatpush1.msra.mxu0 0.0
    %329 = vmatprep.subr.mxu0 0.0
    %330 = vmatpush1.msra.mxu0 0.0
    %331 = vmatprep.subr.mxu0 0.0
    %332 = vmatpush1.msra.mxu0 0.0
    %333 = vmatprep.subr.mxu0 0.0
    %334 = vmatpush1.msra.mxu0 0.0
    %335 = vmatprep.subr.mxu0 0.0
    %336 = vmatpush1.msra.mxu0 0.0
    %337 = vmatprep.subr.mxu0 0.0
    %338 = vmatpush1.msra.mxu0 0.0
    %339 = vmatprep.subr.mxu0 0.0
    %340 = vmatpush1.msra.mxu0 0.0
    %341 = vmatprep.subr.mxu0 0.0
    %342 = vmatpush1.msra.mxu0 0.0
    %343 = vmatprep.subr.mxu0 0.0
    %344 = vmatpush1.msra.mxu0 0.0
    %345 = vmatprep.subr.mxu0 0.0
    %346 = vmatpush1.msra.mxu0 0.0
    %347 = vmatprep.subr.mxu0 0.0
    %348 = vmatpush1.msra.mxu0 0.0
    %349 = vmatprep.subr.mxu0 0.0
    %350 = vmatpush1.msra.mxu0 0.0
    %351 = vmatprep.subr.mxu0 0.0
    %352 = vmatpush1.msra.mxu0 0.0
    %353 = vmatprep.mubr.f32.mxu0 0.0
    %354 = vmatmul.mubr.f32.gmra.mrb[0].mxu0 %v287
    %v355 = vpop.f32.mrb[0].mxu0
    %v356 = vadd.f32 %v285, %v355
    %v357 = vpop.f32.mrb[0].mxu0
    %358 = vdwg.mxu0
    %vm359 = vcmask 155648
    %360 = vst.msk [vmem:[#allocation8] sm:$0x1] %vm359, 0.0
    %362 = vrot.lane.b32.xlu0 %v356, 1
    %v363 = vpop.permute.xlu0 %362
    %vm365 = vcmask 65544
    %366 = vst.msk [vmem:[#allocation8] sm:$0x1] %vm365, %v363
    %vm367 = vcmask 147544
    %368 = vst.msk [vmem:[#allocation8] sm:$0x1] %vm367, %v363
    // Predicated region
    $region30: #{tpu_custom_call.1} parent=1 // pred_check
      _
    $region31: #{tpu_custom_call.1} parent=1 // pred_check_branch
      %370 = sbr.rel (0) target = $region33
    $region32: #{tpu_custom_call.1} parent=1 // pred_region
      %s372 = ssub.s32 128, 128
      %373 = vsyncadd [#allocation5], %s372
      %s375 = sshll.u32 [#allocation4], 4
      %s376 = int_to_ptr.vmem [resolvable:$true] %s375
      %378 = dma.vmem_to_hbm [thread:$0]  %s376, 128, %s7, [#allocation5]
    $region33: #{tpu_custom_call.1} parent=1 // pred_fallthru
      _
    // Predicated region
    $region34: #{tpu_custom_call.1} parent=1 // pred_check
      _
    $region35: #{tpu_custom_call.1} parent=1 // pred_check_branch
      %380 = sbr.rel (0) target = $region37
    $region36: #{tpu_custom_call.1} parent=1 // pred_region
      %s382 = ssub.s32 128, 128
      %383 = vsyncadd [#allocation7], %s382
      %s385 = sshll.u32 [#allocation6], 4
      %s386 = int_to_ptr.vmem [resolvable:$true] %s385
      %388 = dma.vmem_to_hbm [thread:$0]  %s386, 128, %s8, [#allocation7]
    $region37: #{tpu_custom_call.1} parent=1 // pred_fallthru
      _
    // Predicated region
    $region38: #{tpu_custom_call.1} parent=1 // pred_check
      _
    $region39: #{tpu_custom_call.1} parent=1 // pred_check_branch
      %390 = sbr.rel (0) target = $region41
    $region40: #{tpu_custom_call.1} parent=1 // pred_region
      %s392 = ssub.s32 16, 16
      %393 = vsyncadd [#allocation7], %s392
      %s395 = sshll.u32 [#allocation8], 4
      %s396 = int_to_ptr.vmem [resolvable:$true] %s395
      %398 = dma.vmem_to_hbm [thread:$0]  %s396, 16, %s9, [#allocation7]
    $region41: #{tpu_custom_call.1} parent=1 // pred_fallthru
      _
    // Predicated region
    $region42: #{tpu_custom_call.1} parent=1 // pred_check
      _
    $region43: #{tpu_custom_call.1} parent=1 // pred_check_branch
      %400 = sbr.rel (0) target = $region45
    $region44: #{tpu_custom_call.1} parent=1 // pred_region
      %401 = dma.done [#allocation5], 128
    $region45: #{tpu_custom_call.1} parent=1 // pred_fallthru
      _
    // Predicated region
    $region46: #{tpu_custom_call.1} parent=1 // pred_check
      _
    $region47: #{tpu_custom_call.1} parent=1 // pred_check_branch
      %403 = sbr.rel (0) target = $region49
    $region48: #{tpu_custom_call.1} parent=1 // pred_region
      %404 = dma.done [#allocation7], 128
    $region49: #{tpu_custom_call.1} parent=1 // pred_fallthru
      _
    // Predicated region
    $region50: #{tpu_custom_call.1} parent=1 // pred_check
      _
    $region51: #{tpu_custom_call.1} parent=1 // pred_check_branch
      %406 = sbr.rel (0) target = $region53
    $region52: #{tpu_custom_call.1} parent=1 // pred_region
      %407 = dma.done [#allocation7], 16
    $region53: #{tpu_custom_call.1} parent=1 // pred_fallthru
      _
    %408 = vsyncpa [#allocation5], 1
    %409 = vsyncpa [#allocation7], 1

</llo_original>
